<compile_context>
chip_gen: v6e
topology: v6e:2x2x1
jax: 0.10.0
libtpu: 0.0.40
codegen_flags: <defaults>
</compile_context>

<pallas_src>
import functools

import jax
import jax.numpy as jnp
from jax import lax
from jax.experimental import pallas as pl
from jax.experimental.pallas import tpu as pltpu


def _round_up(x, m):
    return (x + m - 1) // m * m


# --------------------------------------------------------------------------
# Kernel
# --------------------------------------------------------------------------
def _chunk_loss(x_ref, t_ref, sl, *, n_classes, gamma, alpha, chunk_rows):
    """Focal loss for one (chunk_rows, 128) sub-chunk of the spatial tile.

    Pure VPU/EUP work: the (small, static) class axis is fully unrolled, so
    there are no cross-lane (XLU) reductions.  Padded / ragged lanes carry
    label -1 and are zeroed by select, so garbage (NaN/Inf) never propagates.
    """
    labels = t_ref[0, sl, :]                                # (rows, 128) int32
    g = float(gamma)
    need_pt = g != 0.0

    # Load + cast each class slice once and reuse it for the max pass and the
    # exp/gather pass (guarded to small C to keep vreg pressure low).
    if n_classes <= 16:
        xs = [x_ref[0, c, sl, :].astype(jnp.float32) for c in range(n_classes)]
        load = lambda c: xs[c]
    else:
        load = lambda c: x_ref[0, c, sl, :].astype(jnp.float32)

    m = load(0)
    for c in range(1, n_classes):
        m = jnp.maximum(m, load(c))

    shape = (chunk_rows, 128)
    ssum = jnp.zeros(shape, jnp.float32)
    xt = jnp.zeros(shape, jnp.float32)
    et = jnp.zeros(shape, jnp.float32) if need_pt else None
    at = jnp.zeros(shape, jnp.float32) if alpha is not None else None
    for c in range(n_classes):
        xc = load(c)
        e = jnp.exp(xc - m)
        ssum = ssum + e
        mask = labels == c              # one compare per class, reused below
        xt = jnp.where(mask, xc, xt)
        if need_pt:
            et = jnp.where(mask, e, et)
        if at is not None:
            at = jnp.where(mask, jnp.float32(alpha[c]), at)

    logpt = (xt - m) - jnp.log(ssum)    # log p_t (<= 0)

    if not need_pt:                     # gamma == 0: plain (weighted) NLL
        loss = -logpt
    else:
        # p_t = exp(x_t - m) / sum(exp): reuses the exp from the class loop plus
        # one reciprocal instead of a second EUP exp.  Full-precision reciprocal
        # keeps us within 1e-5 of the reference (approx=True trades ~1e-4).
        pt = et * pl.reciprocal(ssum)
        omp = jnp.maximum(1.0 - pt, 0.0)          # clamp: pow(neg, g) -> NaN guard
        if g == 1.0:
            focal = omp
        elif g == 2.0:
            focal = omp * omp
        else:
            focal = omp ** g
        loss = -focal * logpt

    if at is not None:
        loss = loss * at

    return jnp.where(labels >= 0, loss, 0.0)      # select, never multiply


def _focal_kernel(x_ref, t_ref, acc_ref, *, n_classes, gamma, alpha,
                  r_chunks, chunk_rows):
    @pl.when(pl.program_id(2) == 0)
    def _():
        acc_ref[...] = jnp.zeros_like(acc_ref)

    chunk = functools.partial(_chunk_loss, x_ref, t_ref, n_classes=n_classes,
                              gamma=gamma, alpha=alpha, chunk_rows=chunk_rows)

    if r_chunks <= 8:                   # small tiles: cheap static unroll
        partial = chunk(pl.ds(0, chunk_rows))
        for r in range(1, r_chunks):
            partial = partial + chunk(pl.ds(r * chunk_rows, chunk_rows))
    else:                               # big tiles: partially-unrolled fori_loop
        def body(r, p):
            off = pl.multiple_of(r * chunk_rows, chunk_rows)
            return p + chunk(pl.ds(off, chunk_rows))
        partial = lax.fori_loop(0, r_chunks, body,
                                jnp.zeros((chunk_rows, 128), jnp.float32),
                                unroll=8)

    if chunk_rows == 8:
        acc_ref[0, 0] += partial
    else:                               # fold (16|32,128) chunk onto the (8,128) acc
        acc_ref[0, 0] += partial.reshape(chunk_rows // 8, 8, 128).sum(axis=0)


# --------------------------------------------------------------------------
# Tiling / wrapper
# --------------------------------------------------------------------------
_MAX_TILE_LANES = 256 * 1024            # ~1-4 MiB logits buffers at small C


def _vmem_budget():
    """Double-buffered input footprint budget, generation-aware.

    v5e/v6e have 128 MiB of physical VMEM, v7x only 64 MiB; keep the pipeline
    footprint around 1/4 of physical (clamped to [12, 24] MiB) and rely on an
    explicit vmem_limit_bytes so the 16/32 MiB scoped default never binds.
    """
    try:
        phys = pltpu.get_tpu_info().vmem_capacity_bytes
    except Exception:
        phys = 64 * 1024 * 1024         # conservative fallback (v7x-sized)
    return min(max(phys // 4, 12 * 1024 * 1024), 24 * 1024 * 1024)


def _choose_tile(hw, n_classes, x_bytes, chunk_rows, budget):
    """Largest spatial tile (power-of-two multiple of the sub-chunk
    granularity, <= 256K lanes) whose double-buffered logits+targets footprint
    fits `budget`.  Big tiles amortize the ~0.35us per-grid-step overhead and
    keep the (memory-bound) kernel near the HBM roofline."""
    gran = chunk_rows * 128
    hw_g = _round_up(hw, gran)
    per_lane = 2 * (n_classes * x_bytes + 4)      # 2x for double buffering
    tile = gran
    while (tile * 2 <= hw_g and tile * 2 <= _MAX_TILE_LANES
           and tile * 2 * per_lane <= budget):
        tile *= 2
    return tile


def focal_loss(inputs, target, gamma=0.0, alpha=None, size_average=True):
    """inputs: (N, C, *spatial) logits; target: (N, *spatial) int labels in [0, C)."""
    N, C = inputs.shape[0], inputs.shape[1]
    HW = 1
    for d in inputs.shape[2:]:
        HW *= int(d)

    if isinstance(alpha, (float, int)):
        alpha = [float(alpha), 1.0 - float(alpha)]
    if alpha is not None:
        alpha = [float(a) for a in alpha]

    x_bytes = jnp.dtype(inputs.dtype).itemsize
    chunk_rows = {1: 32, 2: 16}.get(x_bytes, 8)   # full packed vregs per load
    gran = chunk_rows * 128

    budget = _vmem_budget()
    tile_s = _choose_tile(HW, C, x_bytes, chunk_rows, budget)
    rb = tile_s // 128

    x = inputs.reshape(N, C, HW)        # keep input dtype (bf16 streams halved)
    t = target.reshape(N, HW).astype(jnp.int32)

    # Logits: pad only to one sub-chunk (never to the large tile), so raising
    # the tile size no longer forces a whole-logits HBM copy.  The ragged tail
    # past HW_x is a partial boundary block whose garbage is masked in-kernel.
    HW_x = _round_up(HW, gran)
    if HW_x != HW:
        x = jnp.pad(x, ((0, 0), (0, 0), (0, HW_x - HW)))
    # Targets (cheap int32): pad to the full tile so their blocks are always
    # dense and the pad labels (-1) mask every pad / garbage logit lane.
    HW_t = _round_up(HW, tile_s)
    if HW_t != HW:
        t = jnp.pad(t, ((0, 0), (0, HW_t - HW)), constant_values=-1)

    x = x.reshape(N, C, HW_x // 128, 128)
    t = t.reshape(N, HW_t // 128, 128)

    n_spatial = HW_t // tile_s
    # Extra *parallel* spatial axis: lets v7x's second TensorCore work even
    # when N is 1 / odd; a no-op cost on single-TC v5e/v6e.
    s_outer = 2 if (n_spatial % 2 == 0 and n_spatial >= 2) else 1
    s_inner = n_spatial // s_outer

    kernel = functools.partial(
        _focal_kernel, n_classes=C, gamma=gamma, alpha=alpha,
        r_chunks=rb // chunk_rows, chunk_rows=chunk_rows)

    # Explicit VMEM limit sized to the chosen tiles (double-buffered inputs +
    # resident accumulator) with headroom; stays within v7x's 64 MiB physical.
    footprint = 2 * tile_s * (C * x_bytes + 4) + s_outer * 8 * 128 * 4
    vmem_limit = int(min(max(footprint + 8 * 1024 * 1024, 16 * 1024 * 1024),
                         48 * 1024 * 1024))

    acc = pl.pallas_call(
        kernel,
        out_shape=jax.ShapeDtypeStruct((N, s_outer, 8, 128), jnp.float32),
        grid_spec=pltpu.PrefetchScalarGridSpec(
            num_scalar_prefetch=0,
            grid=(N, s_outer, s_inner),
            in_specs=[
                pl.BlockSpec((1, C, rb, 128),
                             lambda n, so, si: (n, 0, so * s_inner + si, 0)),
                pl.BlockSpec((1, rb, 128),
                             lambda n, so, si: (n, so * s_inner + si, 0)),
            ],
            out_specs=pl.BlockSpec((1, 1, 8, 128),
                                   lambda n, so, si: (n, so, 0, 0)),
        ),
        compiler_params=pltpu.CompilerParams(
            dimension_semantics=("parallel", "parallel", "arbitrary"),
            vmem_limit_bytes=vmem_limit),
    )(x, t)

    total = jnp.sum(acc)                # lane-dense partials -> scalar in JAX
    if size_average:
        return total / (N * HW)
    return total


# --------------------------------------------------------------------------
# Pure-JAX reference + self-test
# --------------------------------------------------------------------------
def _focal_loss_ref(inputs, target, gamma=0.0, alpha=None, size_average=True):
    N, C = inputs.shape[0], inputs.shape[1]
    x = inputs.reshape(N, C, -1).transpose(0, 2, 1).reshape(-1, C).astype(jnp.float32)
    t = target.reshape(-1).astype(jnp.int32)
    logp = jax.nn.log_softmax(x, axis=-1)
    logpt = jnp.take_along_axis(logp, t[:, None], axis=1)[:, 0]
    pt = jnp.exp(logpt)
    if isinstance(alpha, (float, int)):
        alpha = [float(alpha), 1.0 - float(alpha)]
    if alpha is not None:
        a = jnp.asarray(alpha, jnp.float32)
        logpt = logpt * a[t]
    loss = -((1.0 - pt) ** float(gamma)) * logpt
    return loss.mean() if size_average else loss.sum()


if __name__ == "__main__":
    key = jax.random.PRNGKey(0)
    k_x, k_t, k_x2, k_t2 = jax.random.split(key, 4)

    # Default FocalLoss(): gamma=0, alpha=None, size_average=True
    N, C, H, W = 2, 4, 16, 16
    inputs = jax.random.normal(k_x, (N, C, H, W), dtype=jnp.float32)
    target = jax.random.randint(k_t, (N, H, W), 0, C, dtype=jnp.int32)
    out = jax.block_until_ready(focal_loss(inputs, target))
    ref = jax.block_until_ready(_focal_loss_ref(inputs, target))
    assert jnp.allclose(out, ref, atol=1e-5, rtol=1e-5), (out, ref)

    # Focal variant: gamma=2 with per-class alpha weights
    alpha = [0.1, 0.2, 0.3, 0.4]
    out2 = jax.block_until_ready(focal_loss(inputs, target, gamma=2.0, alpha=alpha))
    ref2 = jax.block_until_ready(_focal_loss_ref(inputs, target, gamma=2.0, alpha=alpha))
    assert jnp.allclose(out2, ref2, atol=1e-5, rtol=1e-5), (out2, ref2)

    # Ragged spatial extent, N=1, scalar alpha, non-integer gamma
    N2, C2, H2, W2 = 1, 2, 7, 9
    inputs2 = jax.random.normal(k_x2, (N2, C2, H2, W2), dtype=jnp.float32)
    target2 = jax.random.randint(k_t2, (N2, H2, W2), 0, C2, dtype=jnp.int32)
    out3 = jax.block_until_ready(focal_loss(inputs2, target2, gamma=0.5, alpha=0.25))
    ref3 = jax.block_until_ready(_focal_loss_ref(inputs2, target2, gamma=0.5, alpha=0.25))
    assert jnp.allclose(out3, ref3, atol=1e-5, rtol=1e-5), (out3, ref3)

    print("KERNEL_OK")
</pallas_src>

<mosaic_0001>
module attributes {stable_mosaic.version = 11 : i64} {
  func.func @_focal_kernel(%arg0: i32, %arg1: i32, %arg2: i32, %arg3: memref<1x4x8x128xf32, #tpu.memory_space<vmem>>, %arg4: memref<1x8x128xi32, #tpu.memory_space<vmem>>, %arg5: memref<1x1x8x128xf32, #tpu.memory_space<vmem>>) attributes {dimension_semantics = [#tpu.dimension_semantics<parallel>, #tpu.dimension_semantics<parallel>, #tpu.dimension_semantics<arbitrary>], iteration_bounds = array<i64: 2, 1, 1>, scalar_prefetch = 0 : i64, scratch_operands = 0 : i64, tpu.core_type = #tpu.core_type<tc>, window_params = [{transform_indices = @transform_0, window_bounds = array<i64: 1, 4, 8, 128>}, {transform_indices = @transform_1, window_bounds = array<i64: 1, 8, 128>}, {transform_indices = @transform_2, window_bounds = array<i64: 1, 1, 8, 128>}]} {
    %c0_i32 = arith.constant 0 : i32
    %0 = arith.cmpi eq, %arg2, %c0_i32 : i32
    %1 = arith.extui %0 : i1 to i32
    %c0_i32_0 = arith.constant 0 : i32
    %2 = arith.cmpi ne, %1, %c0_i32_0 : i32
    scf.if %2 {
      %cst_29 = arith.constant 0.000000e+00 : f32
      %57 = vector.broadcast %cst_29 : f32 to vector<1x1x8x128xf32>
      %c0_30 = arith.constant 0 : index
      %c0_31 = arith.constant 0 : index
      %c0_32 = arith.constant 0 : index
      %c0_33 = arith.constant 0 : index
      %58 = vector.load %arg5[%c0_30, %c0_31, %c0_32, %c0_33] : memref<1x1x8x128xf32, #tpu.memory_space<vmem>>, vector<1x1x8x128xf32>
      tpu.vector_store %arg5[%c0_30, %c0_31, %c0_32, %c0_33], %57 {strides = array<i32>} : memref<1x1x8x128xf32, #tpu.memory_space<vmem>>, vector<1x1x8x128xf32>,
    } else {
    }
    %c0 = arith.constant 0 : index
    %c0_1 = arith.constant 0 : index
    %c0_2 = arith.constant 0 : index
    %3 = vector.load %arg4[%c0, %c0_1, %c0_2] : memref<1x8x128xi32, #tpu.memory_space<vmem>>, vector<1x8x128xi32>
    %4 = vector.shape_cast %3 : vector<1x8x128xi32> to vector<8x128xi32>
    %c0_3 = arith.constant 0 : index
    %c0_4 = arith.constant 0 : index
    %c0_5 = arith.constant 0 : index
    %c0_6 = arith.constant 0 : index
    %5 = vector.load %arg3[%c0_3, %c0_4, %c0_5, %c0_6] : memref<1x4x8x128xf32, #tpu.memory_space<vmem>>, vector<1x1x8x128xf32>
    %6 = vector.shape_cast %5 : vector<1x1x8x128xf32> to vector<8x128xf32>
    %c0_7 = arith.constant 0 : index
    %c1 = arith.constant 1 : index
    %c0_8 = arith.constant 0 : index
    %c0_9 = arith.constant 0 : index
    %7 = vector.load %arg3[%c0_7, %c1, %c0_8, %c0_9] : memref<1x4x8x128xf32, #tpu.memory_space<vmem>>, vector<1x1x8x128xf32>
    %8 = vector.shape_cast %7 : vector<1x1x8x128xf32> to vector<8x128xf32>
    %c0_10 = arith.constant 0 : index
    %c2 = arith.constant 2 : index
    %c0_11 = arith.constant 0 : index
    %c0_12 = arith.constant 0 : index
    %9 = vector.load %arg3[%c0_10, %c2, %c0_11, %c0_12] : memref<1x4x8x128xf32, #tpu.memory_space<vmem>>, vector<1x1x8x128xf32>
    %10 = vector.shape_cast %9 : vector<1x1x8x128xf32> to vector<8x128xf32>
    %c0_13 = arith.constant 0 : index
    %c3 = arith.constant 3 : index
    %c0_14 = arith.constant 0 : index
    %c0_15 = arith.constant 0 : index
    %11 = vector.load %arg3[%c0_13, %c3, %c0_14, %c0_15] : memref<1x4x8x128xf32, #tpu.memory_space<vmem>>, vector<1x1x8x128xf32>
    %12 = vector.shape_cast %11 : vector<1x1x8x128xf32> to vector<8x128xf32>
    %13 = arith.maximumf %6, %8 : vector<8x128xf32>
    %14 = arith.maximumf %13, %10 : vector<8x128xf32>
    %15 = arith.maximumf %14, %12 : vector<8x128xf32>
    %cst = arith.constant 0.000000e+00 : f32
    %16 = vector.broadcast %cst : f32 to vector<8x128xf32>
    %cst_16 = arith.constant 0.000000e+00 : f32
    %17 = vector.broadcast %cst_16 : f32 to vector<8x128xf32>
    %18 = arith.subf %6, %15 : vector<8x128xf32>
    %19 = math.exp %18 : vector<8x128xf32>
    %20 = arith.addf %16, %19 : vector<8x128xf32>
    %c0_i32_17 = arith.constant 0 : i32
    %21 = vector.broadcast %c0_i32_17 : i32 to vector<8x128xi32>
    %22 = arith.cmpi eq, %4, %21 : vector<8x128xi32>
    %23 = arith.select %22, %6, %17 : vector<8x128xi1>, vector<8x128xf32>
    %24 = arith.subf %8, %15 : vector<8x128xf32>
    %25 = math.exp %24 : vector<8x128xf32>
    %26 = arith.addf %20, %25 : vector<8x128xf32>
    %c1_i32 = arith.constant 1 : i32
    %27 = vector.broadcast %c1_i32 : i32 to vector<8x128xi32>
    %28 = arith.cmpi eq, %4, %27 : vector<8x128xi32>
    %29 = arith.select %28, %8, %23 : vector<8x128xi1>, vector<8x128xf32>
    %30 = arith.subf %10, %15 : vector<8x128xf32>
    %31 = math.exp %30 : vector<8x128xf32>
    %32 = arith.addf %26, %31 : vector<8x128xf32>
    %c2_i32 = arith.constant 2 : i32
    %33 = vector.broadcast %c2_i32 : i32 to vector<8x128xi32>
    %34 = arith.cmpi eq, %4, %33 : vector<8x128xi32>
    %35 = arith.select %34, %10, %29 : vector<8x128xi1>, vector<8x128xf32>
    %36 = arith.subf %12, %15 : vector<8x128xf32>
    %37 = math.exp %36 : vector<8x128xf32>
    %38 = arith.addf %32, %37 : vector<8x128xf32>
    %c3_i32 = arith.constant 3 : i32
    %39 = vector.broadcast %c3_i32 : i32 to vector<8x128xi32>
    %40 = arith.cmpi eq, %4, %39 : vector<8x128xi32>
    %41 = arith.select %40, %12, %35 : vector<8x128xi1>, vector<8x128xf32>
    %42 = arith.subf %41, %15 : vector<8x128xf32>
    %43 = math.log %38 : vector<8x128xf32>
    %44 = arith.subf %42, %43 : vector<8x128xf32>
    %cst_18 = arith.constant 0.000000e+00 : f32
    %45 = vector.broadcast %cst_18 : f32 to vector<8x128xf32>
    %46 = arith.subf %45, %44 : vector<8x128xf32>
    %c0_i32_19 = arith.constant 0 : i32
    %47 = vector.broadcast %c0_i32_19 : i32 to vector<8x128xi32>
    %48 = arith.cmpi sge, %4, %47 : vector<8x128xi32>
    %cst_20 = arith.constant 0.000000e+00 : f32
    %49 = vector.broadcast %cst_20 : f32 to vector<8x128xf32>
    %50 = arith.select %48, %46, %49 : vector<8x128xi1>, vector<8x128xf32>
    %c0_21 = arith.constant 0 : index
    %c0_22 = arith.constant 0 : index
    %c0_23 = arith.constant 0 : index
    %c0_24 = arith.constant 0 : index
    %51 = vector.load %arg5[%c0_21, %c0_22, %c0_23, %c0_24] : memref<1x1x8x128xf32, #tpu.memory_space<vmem>>, vector<1x1x8x128xf32>
    %52 = vector.shape_cast %51 : vector<1x1x8x128xf32> to vector<8x128xf32>
    %53 = arith.addf %52, %50 : vector<8x128xf32>
    %c0_25 = arith.constant 0 : index
    %c0_26 = arith.constant 0 : index
    %c0_27 = arith.constant 0 : index
    %c0_28 = arith.constant 0 : index
    %54 = vector.load %arg5[%c0_25, %c0_26, %c0_27, %c0_28] : memref<1x1x8x128xf32, #tpu.memory_space<vmem>>, vector<1x1x8x128xf32>
    %55 = vector.shape_cast %54 : vector<1x1x8x128xf32> to vector<8x128xf32>
    %56 = vector.shape_cast %53 : vector<8x128xf32> to vector<1x1x8x128xf32>
    tpu.vector_store %arg5[%c0_25, %c0_26, %c0_27, %c0_28], %56 {strides = array<i32>} : memref<1x1x8x128xf32, #tpu.memory_space<vmem>>, vector<1x1x8x128xf32>,
    return
  }
  func.func @transform_0(%arg0: i32, %arg1: i32, %arg2: i32) -> (i32, i32, i32, i32) {
    %c1_i32 = arith.constant 1 : i32
    %0 = arith.muli %arg1, %c1_i32 : i32
    %1 = arith.addi %0, %arg2 : i32
    %c0_i32 = arith.constant 0 : i32
    %c0_i32_0 = arith.constant 0 : i32
    %c0_i32_1 = arith.constant 0 : i32
    return %arg0, %c0_i32, %1, %c0_i32_0 : i32, i32, i32, i32
  }
  func.func @transform_1(%arg0: i32, %arg1: i32, %arg2: i32) -> (i32, i32, i32) {
    %c1_i32 = arith.constant 1 : i32
    %0 = arith.muli %arg1, %c1_i32 : i32
    %1 = arith.addi %0, %arg2 : i32
    %c0_i32 = arith.constant 0 : i32
    %c0_i32_0 = arith.constant 0 : i32
    return %arg0, %1, %c0_i32 : i32, i32, i32
  }
  func.func @transform_2(%arg0: i32, %arg1: i32, %arg2: i32) -> (i32, i32, i32, i32) {
    %c0_i32 = arith.constant 0 : i32
    %c0_i32_0 = arith.constant 0 : i32
    %c0_i32_1 = arith.constant 0 : i32
    return %arg0, %arg1, %c0_i32, %c0_i32_0 : i32, i32, i32, i32
  }
}

</mosaic_0001>

<llo_original>
// kernel: tpu_custom_call.1
$region0: #{tpu_custom_call.1}
  #allocation0 [shape = 'u32[]', space=smem, size = 0x4, offset = 0x4, fixed_abs, tag = 'smem constant byte address 0x4 - core index']
  #allocation1 [shape = 'u32[144,128]{1,0:T(1,128)}', space=vmem, size = 0x12000, scoped, tag = 'internal scratch']
  %s0 = inlined_call_operand.hbm [shape: f32[2,4,8,128], index: 0, kind: input, shape index: {}]
  %s1 = inlined_call_operand.hbm [shape: s32[2,8,128], index: 1, kind: input, shape index: {}]
  %s2 = inlined_call_operand.hbm [shape: f32[2,1,8,128], index: 2, kind: output, shape index: {}]
  %s3 = sld [smem:[#allocation0]]
  $region53: #{tpu_custom_call.1} parent=0
    _
  %s5 = ssub.s32 1, %s3
  %s6 = scalar_select 0, %s5, %s3
  $region1: #{tpu_custom_call.1} parent=0
    #allocation2 [shape = 'u8[32768]{0}', space=vmem, size = 0x8000, scoped, tag = 'input window, operand 0']
    #allocation3 [shape = 's32[2]{0}', space=sflag, size = 0x8, scoped, tag = 'scoped memory for tpu_custom_call.1']
    #allocation4 [shape = 's32[2]{0}', space=sflag, size = 0x8, scoped, tag = 'scoped memory for tpu_custom_call.1']
    #allocation5 [shape = 'u8[8192]{0}', space=vmem, size = 0x2000, scoped, tag = 'input window, operand 1']
    #allocation6 [shape = 's32[2]{0}', space=sflag, size = 0x8, scoped, tag = 'scoped memory for tpu_custom_call.1']
    #allocation7 [shape = 'u8[8192]{0}', space=vmem, size = 0x2000, scoped, tag = 'output window, operand 0']
    %7 = vsyncpa [#allocation3], 0
    %s8 = scalar_lea.sflag [#allocation3], 1
    %9 = vsyncpa %s8, 0
    %10 = vsyncpa [#allocation6], 0
    %s11 = scalar_lea.sflag [#allocation6], 1
    %12 = vsyncpa %s11, 0
    %13 = vsyncpa [#allocation4], 0
    %s14 = scalar_lea.sflag [#allocation4], 1
    %15 = vsyncpa %s14, 0
    loop: start=0, step=1, limit=4
    $region2: #{tpu_custom_call.1} parent=1 // loop_pre_header
      _
    $region3: #{tpu_custom_call.1} parent=1 // loop_header
      %s17 = sphi 0, %s21
      %p18 = scmp.ge.s32.totalorder %s17, 4
      %s24 = sphi 0, %s43
      %s25 = sphi 0, %s39
      %s26 = sphi 0, %s35
      %s27 = sphi 0, %s24
      %s28 = sphi 0, %s25
      %s29 = sphi 0, %s26
      %s30 = sphi 0, %s27
      %s31 = sphi 0, %s28
      %s32 = sphi 0, %s29
      %s50 = sphi 0, %s52
      %s53 = sphi 0, %s50
      %s54 = sphi 0, %s53
      %s70 = sphi 0, %s54
      %s80 = sphi 0, %s82
      %s83 = sphi 0, %s80
      %s84 = sphi 0, %s83
      %s100 = sphi 0, %s84
      %s108 = sphi 0, %s110
      %s111 = sphi 0, %s108
      %s112 = sphi 0, %s111
      %s128 = sphi 0, %s112
    $region4: #{tpu_custom_call.1} parent=1 // loop_header_branch
      %20 = sbr.rel (%p18) target = $region8
    $region5: #{tpu_custom_call.1} parent=1 // loop_body
      %s22 = ssub.s32 %s17, 1
      %s23 = ssub.s32 %s17, 2
      %s33 = sadd.s32 1, %s26
      %p34 = scmp.ge.s32.totalorder %s33, 1
      %s35 = scalar_select %p34, 0, %s33
      %s36 = sadd.s32 1, %s25
      %s37 = scalar_select %p34, %s36, %s25
      %p38 = scmp.ge.s32.totalorder %s37, 1
      %s39 = scalar_select %p38, 0, %s37
      %s40 = sadd.s32 1, %s24
      %s41 = scalar_select %p38, %s40, %s24
      %p42 = scmp.ge.s32.totalorder %s41, 2
      %s43 = scalar_select %p42, 0, %s41
      %s44 = sadd.s32 %s25, %s26
      %s45 = sadd.s32 %s39, %s35
      %s46 = ssub.s32 %s24, %s43
      %s47 = ssub.s32 %s44, %s45
      %s48 = sor.u32 %s46, %s47
      %p49 = scmp.eq.s32.totalorder %s48, 0
      %s51 = sadd.s32 %s50, 1
      %s52 = scalar_select %p49, %s50, %s51
      %p55 = pneg %p49
      %p56 = scmp.eq.s32.totalorder %s17, 1
      %p57 = por %p55, %p56
      %p58 = scmp.ne.s32.totalorder %s50, %s53
      %p59 = scmp.eq.s32.totalorder %s17, 0
      %p60 = por %p58, %p59
      %p61 = scmp.ne.s32.totalorder %s50, %s53
      %p62 = scmp.eq.s32.totalorder %s22, 1
      %p63 = por %p61, %p62
      %p64 = scmp.ne.s32.totalorder %s53, %s54
      %p65 = scmp.eq.s32.totalorder %s22, 0
      %p66 = por %p64, %p65
      %p67 = scmp.ne.s32.totalorder %s53, %s54
      %p68 = scmp.eq.s32.totalorder %s23, 1
      %p69 = por %p67, %p68
      %p71 = scmp.ne.s32.totalorder %s54, %s70
      %p72 = scmp.eq.s32.totalorder %s23, 0
      %p73 = por %p71, %p72
      %s74 = sadd.s32 %s25, %s26
      %s75 = sadd.s32 %s39, %s35
      %s76 = ssub.s32 %s24, %s43
      %s77 = ssub.s32 %s74, %s75
      %s78 = sor.u32 %s76, %s77
      %p79 = scmp.eq.s32.totalorder %s78, 0
      %s81 = sadd.s32 %s80, 1
      %s82 = scalar_select %p79, %s80, %s81
      %p85 = pneg %p79
      %p86 = scmp.eq.s32.totalorder %s17, 1
      %p87 = por %p85, %p86
      %p88 = scmp.ne.s32.totalorder %s80, %s83
      %p89 = scmp.eq.s32.totalorder %s17, 0
      %p90 = por %p88, %p89
      %p91 = scmp.ne.s32.totalorder %s80, %s83
      %p92 = scmp.eq.s32.totalorder %s22, 1
      %p93 = por %p91, %p92
      %p94 = scmp.ne.s32.totalorder %s83, %s84
      %p95 = scmp.eq.s32.totalorder %s22, 0
      %p96 = por %p94, %p95
      %p97 = scmp.ne.s32.totalorder %s83, %s84
      %p98 = scmp.eq.s32.totalorder %s23, 1
      %p99 = por %p97, %p98
      %p101 = scmp.ne.s32.totalorder %s84, %s100
      %p102 = scmp.eq.s32.totalorder %s23, 0
      %p103 = por %p101, %p102
      %s104 = ssub.s32 %s24, %s43
      %s105 = ssub.s32 %s25, %s39
      %s106 = sor.u32 %s104, %s105
      %p107 = scmp.eq.s32.totalorder %s106, 0
      %s109 = sadd.s32 %s108, 1
      %s110 = scalar_select %p107, %s108, %s109
      %p113 = pneg %p107
      %p114 = scmp.eq.s32.totalorder %s17, 1
      %p115 = por %p113, %p114
      %p116 = scmp.ne.s32.totalorder %s108, %s111
      %p117 = scmp.eq.s32.totalorder %s17, 0
      %p118 = por %p116, %p117
      %p119 = scmp.ne.s32.totalorder %s108, %s111
      %p120 = scmp.eq.s32.totalorder %s22, 1
      %p121 = por %p119, %p120
      %p122 = scmp.ne.s32.totalorder %s111, %s112
      %p123 = scmp.eq.s32.totalorder %s22, 0
      %p124 = por %p122, %p123
      %p125 = scmp.ne.s32.totalorder %s111, %s112
      %p126 = scmp.eq.s32.totalorder %s23, 1
      %p127 = por %p125, %p126
      %p129 = scmp.ne.s32.totalorder %s112, %s128
      %p130 = scmp.eq.s32.totalorder %s23, 0
      %p131 = por %p129, %p130
      %p132 = scmp.le.s32.totalorder 1, %s17
      %p133 = scmp.lt.s32.totalorder %s17, 3
      %p134 = pnand %p132, %p133
      %p135 = pneg %p134
      // Predicated region
      $region9: #{tpu_custom_call.1} parent=5 // pred_check
        _
      $region10: #{tpu_custom_call.1} parent=5 // pred_check_branch
        %137 = sbr.rel (%p134) target = $region12
      $region11: #{tpu_custom_call.1} parent=5 // pred_region
        %s138 = ssub.s32 %s17, 1
      $region12: #{tpu_custom_call.1} parent=5 // pred_fallthru
        _
      %p139 = scmp.lt.s32.totalorder %s17, 2
      // Predicated region
      $region13: #{tpu_custom_call.1} parent=5 // pred_check
        %p140 = pneg %p139
      $region14: #{tpu_custom_call.1} parent=5 // pred_check_branch
        %142 = sbr.rel (%p140) target = $region16
      $region15: #{tpu_custom_call.1} parent=5 // pred_region
        // Predicated region
        $region17: #{tpu_custom_call.1} parent=15 // pred_check
          %p143 = pneg %p60
        $region18: #{tpu_custom_call.1} parent=15 // pred_check_branch
          %145 = sbr.rel (%p143) target = $region20
        $region19: #{tpu_custom_call.1} parent=15 // pred_region
          %s146 = sand.u32 %s50, 1
          %s147 = scalar_lea.sflag [#allocation3], %s146
          %s148 = sand.u32 %s50, 1
          %s149 = smul.addr %s148, 32
          %s150 = scalar_lea.vmem [#allocation2], %s149
          %s151 = sadd.s32 %s25, %s26
          %s153 = ssub.s32 512, 512
          %154 = vsyncadd %s147, %s153
          %s155 = smul.addr %s24, 4
          %s156 = sadd.s32 %s151, %s155
          %s157 = smul.addr %s156, 128
          %s158 = scalar_lea.hbm %s0, %s157
          %s159 = sshll.u32 %s150, 4
          %s160 = int_to_ptr.vmem [resolvable:$true] %s159
          %165 = dma.hbm_to_vmem [thread:$0]  %s158, 512, %s160, %s147, 128, 128, 8
        $region20: #{tpu_custom_call.1} parent=15 // pred_fallthru
          _
        // Predicated region
        $region21: #{tpu_custom_call.1} parent=15 // pred_check
          %p166 = pneg %p90
        $region22: #{tpu_custom_call.1} parent=15 // pred_check_branch
          %168 = sbr.rel (%p166) target = $region24
        $region23: #{tpu_custom_call.1} parent=15 // pred_region
          %s169 = sand.u32 %s80, 1
          %s170 = scalar_lea.sflag [#allocation6], %s169
          %s171 = sand.u32 %s80, 1
          %s172 = smul.addr %s171, 8
          %s173 = scalar_lea.vmem [#allocation5], %s172
          %s174 = sadd.s32 %s25, %s26
          %s176 = ssub.s32 128, 128
          %177 = vsyncadd %s170, %s176
          %s178 = sadd.s32 %s174, %s24
          %s179 = smul.addr %s178, 128
          %s180 = scalar_lea.hbm %s1, %s179
          %s182 = sshll.u32 %s173, 4
          %s183 = int_to_ptr.vmem [resolvable:$true] %s182
          %185 = dma.hbm_to_vmem [thread:$0]  %s180, 128, %s183, %s170
        $region24: #{tpu_custom_call.1} parent=15 // pred_fallthru
          _
      $region16: #{tpu_custom_call.1} parent=5 // pred_fallthru
        _
      %p186 = scmp.le.s32.totalorder 1, %s17
      %p187 = scmp.lt.s32.totalorder %s17, 3
      %p188 = pnand %p186, %p187
      %p189 = pneg %p188
      // Predicated region
      $region25: #{tpu_custom_call.1} parent=5 // pred_check
        _
      $region26: #{tpu_custom_call.1} parent=5 // pred_check_branch
        %191 = sbr.rel (%p188) target = $region28
      $region27: #{tpu_custom_call.1} parent=5 // pred_region
        %s192 = ssub.s32 %s17, 1
        %s193 = sand.u32 %s53, 1
        %s194 = scalar_lea.sflag [#allocation3], %s193
        %s195 = sand.u32 %s53, 1
        %s196 = smul.addr %s195, 32
        %s197 = scalar_lea.vmem [#allocation2], %s196
        // Predicated region
        $region29: #{tpu_custom_call.1} parent=27 // pred_check
          %p198 = pneg %p66
        $region30: #{tpu_custom_call.1} parent=27 // pred_check_branch
          %200 = sbr.rel (%p198) target = $region32
        $region31: #{tpu_custom_call.1} parent=27 // pred_region
          %201 = dma.done %s194, 512
        $region32: #{tpu_custom_call.1} parent=27 // pred_fallthru
          _
        %s202 = sand.u32 %s83, 1
        %s203 = scalar_lea.sflag [#allocation6], %s202
        %s204 = sand.u32 %s83, 1
        %s205 = smul.addr %s204, 8
        %s206 = scalar_lea.vmem [#allocation5], %s205
        // Predicated region
        $region33: #{tpu_custom_call.1} parent=27 // pred_check
          %p207 = pneg %p96
        $region34: #{tpu_custom_call.1} parent=27 // pred_check_branch
          %209 = sbr.rel (%p207) target = $region36
        $region35: #{tpu_custom_call.1} parent=27 // pred_region
          %210 = dma.done %s203, 128
        $region36: #{tpu_custom_call.1} parent=27 // pred_fallthru
          _
        %s211 = sand.u32 %s53, 1
        %s212 = scalar_lea.sflag [#allocation3], %s211
        %s213 = sand.u32 %s53, 1
        %s214 = smul.addr %s213, 32
        %s215 = scalar_lea.vmem [#allocation2], %s214
        %p216 = pneg %p66
        %p217 = pneg %p63
        %s218 = sand.u32 %s83, 1
        %s219 = scalar_lea.sflag [#allocation6], %s218
        %s220 = sand.u32 %s83, 1
        %s221 = smul.addr %s220, 8
        %s222 = scalar_lea.vmem [#allocation5], %s221
        %p223 = pneg %p96
        %p224 = pneg %p93
        %p225 = pneg %p124
        %p226 = pneg %p121
        %s227 = sand.u32 %s111, 1
        %s228 = scalar_lea.sflag [#allocation4], %s227
        %s229 = sand.u32 %s111, 1
        %s230 = smul.addr %s229, 8
        %s231 = scalar_lea.vmem [#allocation7], %s230
        %s232 = sadd.s32 %s28, %s29
        %s233 = sadd.s32 %s28, %s29
        %p234 = scmp.eq.s32.totalorder %s29, 0
        // Predicated region
        $region37: #{tpu_custom_call.1} parent=27 // pred_check
          %p235 = pneg %p234
        $region38: #{tpu_custom_call.1} parent=27 // pred_check_branch
          %237 = sbr.rel (%p235) target = $region40
        $region39: #{tpu_custom_call.1} parent=27 // pred_region
          %238 = vst [vmem:[%s231] sm:$0xff] 0.0
        $region40: #{tpu_custom_call.1} parent=27 // pred_fallthru
          _
        %v239 = vld [vmem:[%s206] sm:$0xff]
        %v240 = vld [vmem:[%s197] sm:$0xff]
        %s241 = scalar_lea.vmem %s197, 8 [#allocation2]
        %v242 = vld [vmem:[%s241] sm:$0xff]
        %s243 = scalar_lea.vmem %s197, 16 [#allocation2]
        %v244 = vld [vmem:[%s243] sm:$0xff]
        %s245 = scalar_lea.vmem %s197, 24 [#allocation2]
        %v246 = vld [vmem:[%s245] sm:$0xff]
        %v247 = vmax.f32 %v240, %v242
        %v248 = vmax.f32 %v247, %v244
        %v249 = vmax.f32 %v248, %v246
        %v250 = vsub.f32 %v240, %v249
        %v251 = vmul.f32 %v250, 1.442695
        %v252 = vpow.pop %v251
        %v253 = vadd.f32 %v252, 0.0
        %vm254 = vcmp.eq.s32.totalorder %v239, 0
        %v255 = vsel %vm254, %v240, 0.0
        %v256 = vsub.f32 %v242, %v249
        %v257 = vmul.f32 %v256, 1.442695
        %v258 = vpow.pop %v257
        %v259 = vadd.f32 %v253, %v258
        %vm260 = vcmp.eq.s32.totalorder %v239, 1
        %v261 = vsel %vm260, %v242, %v255
        %v262 = vsub.f32 %v244, %v249
        %v263 = vmul.f32 %v262, 1.442695
        %v264 = vpow.pop %v263
        %v265 = vadd.f32 %v259, %v264
        %vm266 = vcmp.eq.s32.totalorder %v239, 2
        %v267 = vsel %vm266, %v244, %v261
        %v268 = vsub.f32 %v246, %v249
        %v269 = vmul.f32 %v268, 1.442695
        %v270 = vpow.pop %v269
        %v271 = vadd.f32 %v265, %v270
        %vm272 = vcmp.eq.s32.totalorder %v239, 3
        %v273 = vsel %vm272, %v246, %v267
        %v274 = vsub.f32 %v273, %v249
        %v275 = vlog2.pop %v271
        %v276 = vmul.f32 %v275, 0.6931472
        %v277 = vsub.f32 %v274, %v276
        %v278 = vsub.f32 0.0, %v277
        %vm279 = vcmp.ge.s32.totalorder %v239, 0
        %v280 = vsel %vm279, %v278, 0.0
        %v281 = vld [vmem:[%s231] sm:$0xff]
        %v282 = vadd.f32 %v281, %v280
        %283 = vst [vmem:[%s231] sm:$0xff] %v282
        %s284 = sand.u32 %s111, 1
        %s285 = scalar_lea.sflag [#allocation4], %s284
        %s286 = sand.u32 %s111, 1
        %s287 = smul.addr %s286, 8
        %s288 = scalar_lea.vmem [#allocation7], %s287
        // Predicated region
        $region41: #{tpu_custom_call.1} parent=27 // pred_check
          %p289 = pneg %p121
        $region42: #{tpu_custom_call.1} parent=27 // pred_check_branch
          %291 = sbr.rel (%p289) target = $region44
        $region43: #{tpu_custom_call.1} parent=27 // pred_region
          %s293 = ssub.s32 128, 128
          %294 = vsyncadd %s285, %s293
          %s295 = sadd.s32 %s28, %s27
          %s296 = smul.addr %s295, 128
          %s297 = scalar_lea.hbm %s2, %s296
          %s299 = sshll.u32 %s288, 4
          %s300 = int_to_ptr.vmem [resolvable:$true] %s299
          %302 = dma.vmem_to_hbm [thread:$0]  %s300, 128, %s297, %s285
        $region44: #{tpu_custom_call.1} parent=27 // pred_fallthru
          _
      $region28: #{tpu_custom_call.1} parent=5 // pred_fallthru
        _
      %p303 = scmp.le.s32.totalorder 2, %s17
      // Predicated region
      $region45: #{tpu_custom_call.1} parent=5 // pred_check
        %p304 = pneg %p303
      $region46: #{tpu_custom_call.1} parent=5 // pred_check_branch
        %306 = sbr.rel (%p304) target = $region48
      $region47: #{tpu_custom_call.1} parent=5 // pred_region
        %s307 = ssub.s32 %s17, 2
        // Predicated region
        $region49: #{tpu_custom_call.1} parent=47 // pred_check
          %p308 = pneg %p127
        $region50: #{tpu_custom_call.1} parent=47 // pred_check_branch
          %310 = sbr.rel (%p308) target = $region52
        $region51: #{tpu_custom_call.1} parent=47 // pred_region
          %s311 = sand.u32 %s112, 1
          %s312 = scalar_lea.sflag [#allocation4], %s311
          %s313 = sand.u32 %s112, 1
          %s314 = smul.addr %s313, 8
          %s315 = scalar_lea.vmem [#allocation7], %s314
          %316 = dma.done %s312, 128
        $region52: #{tpu_custom_call.1} parent=47 // pred_fallthru
          _
      $region48: #{tpu_custom_call.1} parent=5 // pred_fallthru
        _
    $region6: #{tpu_custom_call.1} parent=1 // loop_footer
      %s21 = sadd.s32 1, %s17
    $region7: #{tpu_custom_call.1} parent=1 // loop_footer_branch
      %16 = sbr.rel target = $region3
    $region8: #{tpu_custom_call.1} parent=1 // loop_exit
      _
    %317 = vsyncpa [#allocation3], 1
    %s318 = scalar_lea.sflag [#allocation3], 1
    %319 = vsyncpa %s318, 1
    %320 = vsyncpa [#allocation6], 1
    %s321 = scalar_lea.sflag [#allocation6], 1
    %322 = vsyncpa %s321, 1
    %323 = vsyncpa [#allocation4], 1
    %s324 = scalar_lea.sflag [#allocation4], 1
    %325 = vsyncpa %s324, 1

</llo_original>
